<compile_context>
chip_gen: v7x
topology: tpu7x:2x2x1
jax: 0.10.0
libtpu: 0.0.40
codegen_flags: <defaults>
</compile_context>

<pallas_src>
import jax
import jax.numpy as jnp
from jax import lax
from jax.experimental import pallas as pl
from jax.experimental.pallas import tpu as pltpu

_VMEM_LIMIT_BYTES = 64 * 1024 * 1024  # <= physical VMEM on v5e/v6e/v7x TensorCores.
_MAX_ATTN_TILE = 256                  # matches v6e/v7x 2x256^2 MXU tiles.
_MAX_LIN_TILE = 512                   # bigger tiles => fewer grid steps for the projections.


def _pick_tile(n, max_tile):
    """Largest 8-aligned tile <= max_tile that evenly divides n, else n (full dim)."""
    t = max_tile
    while t >= 8:
        if n % t == 0:
            return t
        t //= 2
    return n  # full-dim block is always legal


# ---------------------------------------------------------------------------
# Kernel 1: tiled linear projection  y = x @ W + b
# ---------------------------------------------------------------------------
def _linear_kernel(x_ref, w_ref, b_ref, o_ref):
    # x_ref: (1, TL, D) input tile; w_ref: (D, D) bf16 (pre-transposed to (in, out));
    # b_ref: (1, D) f32.
    x = x_ref[0].astype(jnp.bfloat16)                                # bf16 MXU operand
    y = jnp.dot(x, w_ref[...], preferred_element_type=jnp.float32)   # f32 accumulate
    o_ref[0] = (y + b_ref[...]).astype(o_ref.dtype)


def _linear_project(x, w, b, *, out_dtype=jnp.bfloat16):
    """y[b, l, :] = x[b, l, :] @ w + b, tiled over (batch, sequence)."""
    B, L, D = x.shape
    tl = _pick_tile(L, _MAX_LIN_TILE)

    x_spec = pl.BlockSpec((1, tl, D), lambda bi, li: (bi, li, 0))
    return pl.pallas_call(
        _linear_kernel,
        out_shape=jax.ShapeDtypeStruct((B, L, D), out_dtype),
        grid_spec=pltpu.PrefetchScalarGridSpec(
            num_scalar_prefetch=0,
            grid=(B, L // tl),
            in_specs=[
                x_spec,
                pl.BlockSpec((D, D), lambda bi, li: (0, 0)),   # grid-invariant: not re-fetched
                pl.BlockSpec((1, D), lambda bi, li: (0, 0)),
            ],
            out_specs=x_spec,
        ),
        compiler_params=pltpu.CompilerParams(
            dimension_semantics=("parallel", "parallel"),
            vmem_limit_bytes=_VMEM_LIMIT_BYTES),
    )(x, w, b)


# ---------------------------------------------------------------------------
# Kernel 2: flash-style attention + fused out_proj + bias + residual
# ---------------------------------------------------------------------------
def _flash_attn_kernel(qp_ref, kp_ref, vp_ref, resid_ref, wo_ref, bo_ref,
                       o_ref, m_sc, l_sc, acc_sc):
    ki = pl.program_id(2)

    @pl.when(ki == 0)
    def _init():
        m_sc[...] = jnp.full(m_sc.shape, -jnp.inf, dtype=m_sc.dtype)
        l_sc[...] = jnp.zeros_like(l_sc)
        acc_sc[...] = jnp.zeros_like(acc_sc)

    q = qp_ref[0]          # (TQ, D) bf16 — softmax scale already folded in
    k = kp_ref[0]          # (TK, D) bf16
    v = vp_ref[0]          # (TK, D) bf16

    # Scores (TQ, TK): contract on the feature dim directly — no K^T materialized.
    s = lax.dot_general(q, k, dimension_numbers=(((1,), (1,)), ((), ())),
                        preferred_element_type=jnp.float32)

    # Online softmax update (f32 vector math).
    m_prev = m_sc[...]
    m_new = jnp.maximum(m_prev, jnp.max(s, axis=-1, keepdims=True))
    alpha = jnp.exp(m_prev - m_new)
    p = jnp.exp(s - m_new)
    l_sc[...] = alpha * l_sc[...] + jnp.sum(p, axis=-1, keepdims=True)
    acc_sc[...] = alpha * acc_sc[...] + jnp.dot(
        p.astype(jnp.bfloat16), v, preferred_element_type=jnp.float32)
    m_sc[...] = m_new

    # Dropout on attention probabilities is identity in eval mode.
    @pl.when(ki == pl.num_programs(2) - 1)
    def _finalize():
        inv_l = pl.reciprocal(l_sc[...], approx=True)        # EUP vrcp: ~free
        attn = (acc_sc[...] * inv_l).astype(jnp.bfloat16)    # (TQ, D)
        out = jnp.dot(attn, wo_ref[...], preferred_element_type=jnp.float32)
        o_ref[0] = (out + bo_ref[...] + resid_ref[0]).astype(o_ref.dtype)


def cross_attention(query, key, value, params, *, scale):
    """query: (B, Lq, D); key/value: (B, Lk, D).  params in PyTorch nn.Linear
    convention (weight shape (out, in)).  D should be a multiple of 128 for
    lane-dense stores; sequence tiles are picked as 8-aligned divisors."""
    B, Lq, D = query.shape
    _, Lk, _ = key.shape
    f32, bf16 = jnp.float32, jnp.bfloat16

    # Pre-transpose weights to (in, out); cast MXU operands to bf16 (f32
    # accumulation is preserved via preferred_element_type in the kernels).
    # Fold the softmax scale into the Q projection:
    #   (x @ Wq + bq) * scale == x @ (Wq * scale) + bq * scale.
    wq = (params["wq"].T.astype(f32) * scale).astype(bf16)
    bq = (params["bq"].astype(f32) * scale).reshape(1, D)
    wk = params["wk"].T.astype(bf16)
    bk = params["bk"].astype(f32).reshape(1, D)
    wv = params["wv"].T.astype(bf16)
    bv = params["bv"].astype(f32).reshape(1, D)
    wo = params["wo"].T.astype(bf16)
    bo = params["bo"].astype(f32).reshape(1, D)

    # Q/K/V projections hoisted out of the attention grid (computed once per
    # batch / kv tile, never per query tile).  bf16 outputs halve HBM traffic
    # into the attention kernel.
    qp = _linear_project(query, wq, bq)
    kp = _linear_project(key, wk, bk)
    vp = _linear_project(value, wv, bv)

    tq = _pick_tile(Lq, _MAX_ATTN_TILE)
    tk = _pick_tile(Lk, _MAX_ATTN_TILE)

    q_spec = pl.BlockSpec((1, tq, D), lambda b, qi, ki: (b, qi, 0))
    kv_spec = pl.BlockSpec((1, tk, D), lambda b, qi, ki: (b, ki, 0))
    wo_spec = pl.BlockSpec((D, D), lambda b, qi, ki: (0, 0))
    bo_spec = pl.BlockSpec((1, D), lambda b, qi, ki: (0, 0))

    return pl.pallas_call(
        _flash_attn_kernel,
        out_shape=jax.ShapeDtypeStruct((B, Lq, D), query.dtype),
        grid_spec=pltpu.PrefetchScalarGridSpec(
            num_scalar_prefetch=0,
            grid=(B, Lq // tq, Lk // tk),
            in_specs=[q_spec, kv_spec, kv_spec, q_spec, wo_spec, bo_spec],
            out_specs=q_spec,
            scratch_shapes=[
                pltpu.VMEM((tq, 1), f32),   # running max
                pltpu.VMEM((tq, 1), f32),   # running softmax denom
                pltpu.VMEM((tq, D), f32),   # output accumulator
            ]),
        compiler_params=pltpu.CompilerParams(
            dimension_semantics=("parallel", "parallel", "arbitrary"),
            vmem_limit_bytes=_VMEM_LIMIT_BYTES),
    )(qp, kp, vp, query, wo, bo)


# ---------------------------------------------------------------------------
# Pure-JAX reference (eval mode) + deterministic init + test
# ---------------------------------------------------------------------------
def reference_cross_attention(query, key, value, params, *, scale):
    def linear(x, w, b):
        return jnp.einsum("bld,od->blo", x, w) + b
    Q = linear(query, params["wq"], params["bq"])
    K = linear(key, params["wk"], params["bk"])
    V = linear(value, params["wv"], params["bv"])
    scores = jnp.einsum("bqd,bkd->bqk", Q, K) * scale
    probs = jax.nn.softmax(scores, axis=-1)
    attn_out = jnp.einsum("bqk,bkd->bqd", probs, V)
    out = linear(attn_out, params["wo"], params["bo"])
    return out + query


def init_params(key, dim):
    """Mimics nn.Linear default init: uniform(-1/sqrt(dim), 1/sqrt(dim))."""
    bound = 1.0 / (dim ** 0.5)
    names = ["wq", "bq", "wk", "bk", "wv", "bv", "wo", "bo"]
    keys = jax.random.split(key, len(names))
    params = {}
    for n, k in zip(names, keys):
        shape = (dim, dim) if n.startswith("w") else (dim,)
        params[n] = jax.random.uniform(
            k, shape, dtype=jnp.float32, minval=-bound, maxval=bound)
    return params


if __name__ == "__main__":
    # Small but TPU-friendly shapes: D multiple of 128, 8-aligned sequences,
    # multiple query and key tiles so the online softmax / q-tiling is exercised.
    B, Lq, Lk, D = 2, 512, 384, 128
    root = jax.random.PRNGKey(0)
    kq, kk, kv, kprm = jax.random.split(root, 4)

    query = jax.random.normal(kq, (B, Lq, D), dtype=jnp.float32)
    key = jax.random.normal(kk, (B, Lk, D), dtype=jnp.float32)
    value = jax.random.normal(kv, (B, Lk, D), dtype=jnp.float32)
    params = init_params(kprm, D)
    scale = D ** (-0.5)

    out = cross_attention(query, key, value, params, scale=scale)
    out = jax.block_until_ready(out)

    ref = reference_cross_attention(query, key, value, params, scale=scale)
    assert out.shape == (B, Lq, D)
    max_err = float(jnp.max(jnp.abs(out - ref)))
    # bf16 MXU operands + approx reciprocal => tolerance loosened vs pure f32.
    assert jnp.allclose(out, ref, atol=2e-2, rtol=2e-2), (
        f"mismatch vs reference (max abs err {max_err:.3e})")

    print("KERNEL_OK")
</pallas_src>

<mosaic_0001>
module attributes {stable_mosaic.version = 11 : i64} {
  func.func @_linear_kernel(%arg0: i32, %arg1: i32, %arg2: memref<1x512x128xf32, #tpu.memory_space<vmem>>, %arg3: memref<128x128xbf16, #tpu.memory_space<vmem>>, %arg4: memref<1x128xf32, #tpu.memory_space<vmem>>, %arg5: memref<1x512x128xbf16, #tpu.memory_space<vmem>>) attributes {dimension_semantics = [#tpu.dimension_semantics<parallel>, #tpu.dimension_semantics<parallel>], iteration_bounds = array<i64: 2, 1>, scalar_prefetch = 0 : i64, scratch_operands = 0 : i64, tpu.core_type = #tpu.core_type<tc>, window_params = [{transform_indices = @transform_0, window_bounds = array<i64: 1, 512, 128>}, {pipeline_mode = #tpu.pipeline_mode<synchronous>, transform_indices = @transform_1, window_bounds = array<i64: 128, 128>}, {pipeline_mode = #tpu.pipeline_mode<synchronous>, transform_indices = @transform_2, window_bounds = array<i64: 1, 128>}, {transform_indices = @transform_3, window_bounds = array<i64: 1, 512, 128>}]} {
    %c0 = arith.constant 0 : index
    %c0_0 = arith.constant 0 : index
    %c0_1 = arith.constant 0 : index
    %0 = vector.load %arg2[%c0, %c0_0, %c0_1] : memref<1x512x128xf32, #tpu.memory_space<vmem>>, vector<1x512x128xf32>
    %1 = vector.shape_cast %0 : vector<1x512x128xf32> to vector<512x128xf32>
    %2 = arith.truncf %1 : vector<512x128xf32> to vector<512x128xbf16>
    %c0_2 = arith.constant 0 : index
    %c0_3 = arith.constant 0 : index
    %3 = vector.load %arg3[%c0_2, %c0_3] : memref<128x128xbf16, #tpu.memory_space<vmem>>, vector<128x128xbf16>
    %cst = arith.constant dense<0.000000e+00> : vector<512x128xf32>
    %4 = tpu.matmul %2, %3, %cst {dimension_numbers = #tpu.dot_dimension_numbers<[1], [0], [0], [1], [0, 0, 1, 1], [], []>} : vector<512x128xbf16>, vector<128x128xbf16>, vector<512x128xf32> -> vector<512x128xf32>
    %c0_4 = arith.constant 0 : index
    %c0_5 = arith.constant 0 : index
    %5 = vector.load %arg4[%c0_4, %c0_5] : memref<1x128xf32, #tpu.memory_space<vmem>>, vector<1x128xf32>
    %6 = vector.broadcast %5 : vector<1x128xf32> to vector<512x128xf32>
    %7 = arith.addf %4, %6 : vector<512x128xf32>
    %8 = arith.truncf %7 : vector<512x128xf32> to vector<512x128xbf16>
    %c0_6 = arith.constant 0 : index
    %c0_7 = arith.constant 0 : index
    %c0_8 = arith.constant 0 : index
    %9 = vector.load %arg5[%c0_6, %c0_7, %c0_8] : memref<1x512x128xbf16, #tpu.memory_space<vmem>>, vector<1x512x128xbf16>
    %10 = vector.shape_cast %9 : vector<1x512x128xbf16> to vector<512x128xbf16>
    %11 = vector.shape_cast %8 : vector<512x128xbf16> to vector<1x512x128xbf16>
    tpu.vector_store %arg5[%c0_6, %c0_7, %c0_8], %11 {strides = array<i32>} : memref<1x512x128xbf16, #tpu.memory_space<vmem>>, vector<1x512x128xbf16>,
    return
  }
  func.func @transform_0(%arg0: i32, %arg1: i32) -> (i32, i32, i32) {
    %c0_i32 = arith.constant 0 : i32
    %c0_i32_0 = arith.constant 0 : i32
    return %arg0, %arg1, %c0_i32 : i32, i32, i32
  }
  func.func @transform_1(%arg0: i32, %arg1: i32) -> (i32, i32) {
    %c0_i32 = arith.constant 0 : i32
    %c0_i32_0 = arith.constant 0 : i32
    %c0_i32_1 = arith.constant 0 : i32
    return %c0_i32, %c0_i32_0 : i32, i32
  }
  func.func @transform_2(%arg0: i32, %arg1: i32) -> (i32, i32) {
    %c0_i32 = arith.constant 0 : i32
    %c0_i32_0 = arith.constant 0 : i32
    %c0_i32_1 = arith.constant 0 : i32
    return %c0_i32, %c0_i32_0 : i32, i32
  }
  func.func @transform_3(%arg0: i32, %arg1: i32) -> (i32, i32, i32) {
    %c0_i32 = arith.constant 0 : i32
    %c0_i32_0 = arith.constant 0 : i32
    return %arg0, %arg1, %c0_i32 : i32, i32, i32
  }
}

</mosaic_0001>

<llo_original>
// kernel: tpu_custom_call.1
$region0: #{tpu_custom_call.1}
  #allocation0 [shape = 'u32[]', space=smem, size = 0x4, offset = 0x4, fixed_abs, tag = 'smem constant byte address 0x4 - core index']
  #allocation1 [shape = 'u32[144,128]{1,0:T(1,128)}', space=vmem, size = 0x12000, scoped, tag = 'internal scratch']
  %s0 = inlined_call_operand.hbm [shape: f32[2,512,128], index: 0, kind: input, shape index: {}]
  %s1 = inlined_call_operand.hbm [shape: bf16[128,128], index: 1, kind: input, shape index: {}]
  %s2 = inlined_call_operand.hbm [shape: f32[1,128], index: 2, kind: input, shape index: {}]
  %s3 = inlined_call_operand.hbm [shape: bf16[2,512,128], index: 3, kind: output, shape index: {}]
  %s4 = sld [smem:[#allocation0]]
  $region57: #{tpu_custom_call.1} parent=0
    _
  %s6 = ssub.s32 1, %s4
  %s7 = scalar_select 0, %s6, %s4
  $region1: #{tpu_custom_call.1} parent=0
    #allocation2 [shape = 'u8[524288]{0}', space=vmem, size = 0x80000, scoped, tag = 'input window, operand 0']
    #allocation3 [shape = 's32[2]{0}', space=sflag, size = 0x8, scoped, tag = 'scoped memory for tpu_custom_call.1']
    #allocation4 [shape = 's32[2]{0}', space=sflag, size = 0x8, scoped, tag = 'scoped memory for tpu_custom_call.1']
    #allocation5 [shape = 'u8[32768]{0}', space=vmem, size = 0x8000, scoped, tag = 'input window, operand 1, single buffered']
    #allocation6 [shape = 's32[1]{0}', space=sflag, size = 0x4, scoped, tag = 'scoped memory for tpu_custom_call.1']
    #allocation7 [shape = 'u8[512]{0}', space=vmem, size = 0x400, scoped, tag = 'input window, operand 2, single buffered']
    #allocation8 [shape = 'u8[262144]{0}', space=vmem, size = 0x40000, scoped, tag = 'output window, operand 0']
    %8 = vsyncpa [#allocation3], 0
    %s9 = scalar_lea.sflag [#allocation3], 1
    %10 = vsyncpa %s9, 0
    %11 = vsyncpa [#allocation6], 0
    %12 = vsyncpa [#allocation4], 0
    %s13 = scalar_lea.sflag [#allocation4], 1
    %14 = vsyncpa %s13, 0
    loop: start=0, step=1, limit=4
    $region2: #{tpu_custom_call.1} parent=1 // loop_pre_header
      _
    $region3: #{tpu_custom_call.1} parent=1 // loop_header
      %s16 = sphi 0, %s20
      %p17 = scmp.ge.s32.totalorder %s16, 4
      %s23 = sphi 0, %s35
      %s24 = sphi 0, %s31
      %s25 = sphi 0, %s23
      %s26 = sphi 0, %s24
      %s27 = sphi 0, %s25
      %s28 = sphi 0, %s26
      %s40 = sphi 0, %s42
      %s43 = sphi 0, %s40
      %s44 = sphi 0, %s43
      %s60 = sphi 0, %s44
      %s64 = sphi 0, %s64
      %s66 = sphi 0, %s64
      %s67 = sphi 0, %s66
      %s81 = sphi 0, %s67
      %s85 = sphi 0, %s85
      %s87 = sphi 0, %s85
      %s88 = sphi 0, %s87
      %s102 = sphi 0, %s88
      %s110 = sphi 0, %s112
      %s113 = sphi 0, %s110
      %s114 = sphi 0, %s113
      %s130 = sphi 0, %s114
    $region4: #{tpu_custom_call.1} parent=1 // loop_header_branch
      %19 = sbr.rel (%p17) target = $region8
    $region5: #{tpu_custom_call.1} parent=1 // loop_body
      %s21 = ssub.s32 %s16, 1
      %s22 = ssub.s32 %s16, 2
      %s29 = sadd.s32 1, %s24
      %p30 = scmp.ge.s32.totalorder %s29, 1
      %s31 = scalar_select %p30, 0, %s29
      %s32 = sadd.s32 1, %s23
      %s33 = scalar_select %p30, %s32, %s23
      %p34 = scmp.ge.s32.totalorder %s33, 2
      %s35 = scalar_select %p34, 0, %s33
      %s36 = ssub.s32 %s23, %s35
      %s37 = ssub.s32 %s24, %s31
      %s38 = sor.u32 %s36, %s37
      %p39 = scmp.eq.s32.totalorder %s38, 0
      %s41 = sadd.s32 %s40, 1
      %s42 = scalar_select %p39, %s40, %s41
      %p45 = pneg %p39
      %p46 = scmp.eq.s32.totalorder %s16, 1
      %p47 = por %p45, %p46
      %p48 = scmp.ne.s32.totalorder %s40, %s43
      %p49 = scmp.eq.s32.totalorder %s16, 0
      %p50 = por %p48, %p49
      %p51 = scmp.ne.s32.totalorder %s40, %s43
      %p52 = scmp.eq.s32.totalorder %s21, 1
      %p53 = por %p51, %p52
      %p54 = scmp.ne.s32.totalorder %s43, %s44
      %p55 = scmp.eq.s32.totalorder %s21, 0
      %p56 = por %p54, %p55
      %p57 = scmp.ne.s32.totalorder %s43, %s44
      %p58 = scmp.eq.s32.totalorder %s22, 1
      %p59 = por %p57, %p58
      %p61 = scmp.ne.s32.totalorder %s44, %s60
      %p62 = scmp.eq.s32.totalorder %s22, 0
      %p63 = por %p61, %p62
      %s65 = sadd.s32 %s64, 1
      %p68 = scmp.eq.s32.totalorder %s16, 1
      %p69 = scmp.ne.s32.totalorder %s64, %s66
      %p70 = scmp.eq.s32.totalorder %s16, 0
      %p71 = por %p69, %p70
      %p72 = scmp.ne.s32.totalorder %s64, %s66
      %p73 = scmp.eq.s32.totalorder %s21, 1
      %p74 = por %p72, %p73
      %p75 = scmp.ne.s32.totalorder %s66, %s67
      %p76 = scmp.eq.s32.totalorder %s21, 0
      %p77 = por %p75, %p76
      %p78 = scmp.ne.s32.totalorder %s66, %s67
      %p79 = scmp.eq.s32.totalorder %s22, 1
      %p80 = por %p78, %p79
      %p82 = scmp.ne.s32.totalorder %s67, %s81
      %p83 = scmp.eq.s32.totalorder %s22, 0
      %p84 = por %p82, %p83
      %s86 = sadd.s32 %s85, 1
      %p89 = scmp.eq.s32.totalorder %s16, 1
      %p90 = scmp.ne.s32.totalorder %s85, %s87
      %p91 = scmp.eq.s32.totalorder %s16, 0
      %p92 = por %p90, %p91
      %p93 = scmp.ne.s32.totalorder %s85, %s87
      %p94 = scmp.eq.s32.totalorder %s21, 1
      %p95 = por %p93, %p94
      %p96 = scmp.ne.s32.totalorder %s87, %s88
      %p97 = scmp.eq.s32.totalorder %s21, 0
      %p98 = por %p96, %p97
      %p99 = scmp.ne.s32.totalorder %s87, %s88
      %p100 = scmp.eq.s32.totalorder %s22, 1
      %p101 = por %p99, %p100
      %p103 = scmp.ne.s32.totalorder %s88, %s102
      %p104 = scmp.eq.s32.totalorder %s22, 0
      %p105 = por %p103, %p104
      %s106 = ssub.s32 %s23, %s35
      %s107 = ssub.s32 %s24, %s31
      %s108 = sor.u32 %s106, %s107
      %p109 = scmp.eq.s32.totalorder %s108, 0
      %s111 = sadd.s32 %s110, 1
      %s112 = scalar_select %p109, %s110, %s111
      %p115 = pneg %p109
      %p116 = scmp.eq.s32.totalorder %s16, 1
      %p117 = por %p115, %p116
      %p118 = scmp.ne.s32.totalorder %s110, %s113
      %p119 = scmp.eq.s32.totalorder %s16, 0
      %p120 = por %p118, %p119
      %p121 = scmp.ne.s32.totalorder %s110, %s113
      %p122 = scmp.eq.s32.totalorder %s21, 1
      %p123 = por %p121, %p122
      %p124 = scmp.ne.s32.totalorder %s113, %s114
      %p125 = scmp.eq.s32.totalorder %s21, 0
      %p126 = por %p124, %p125
      %p127 = scmp.ne.s32.totalorder %s113, %s114
      %p128 = scmp.eq.s32.totalorder %s22, 1
      %p129 = por %p127, %p128
      %p131 = scmp.ne.s32.totalorder %s114, %s130
      %p132 = scmp.eq.s32.totalorder %s22, 0
      %p133 = por %p131, %p132
      %p134 = scmp.le.s32.totalorder 1, %s16
      %p135 = scmp.lt.s32.totalorder %s16, 3
      %p136 = pnand %p134, %p135
      %p137 = pneg %p136
      // Predicated region
      $region9: #{tpu_custom_call.1} parent=5 // pred_check
        _
      $region10: #{tpu_custom_call.1} parent=5 // pred_check_branch
        %139 = sbr.rel (%p136) target = $region12
      $region11: #{tpu_custom_call.1} parent=5 // pred_region
        %s140 = ssub.s32 %s16, 1
        // Predicated region
        $region13: #{tpu_custom_call.1} parent=11 // pred_check
          %p141 = pneg %p77
        $region14: #{tpu_custom_call.1} parent=11 // pred_check_branch
          %143 = sbr.rel (%p141) target = $region16
        $region15: #{tpu_custom_call.1} parent=11 // pred_region
          %s145 = ssub.s32 1024, 1024
          %146 = vsyncadd [#allocation6], %s145
          %s147 = sshll.u32 [#allocation5], 4
          %s148 = int_to_ptr.vmem [resolvable:$true] %s147
          %153 = dma.hbm_to_vmem [thread:$0]  %s1, 1024, %s148, [#allocation6], 64, 64, 4
        $region16: #{tpu_custom_call.1} parent=11 // pred_fallthru
          _
        // Predicated region
        $region17: #{tpu_custom_call.1} parent=11 // pred_check
          %p154 = pneg %p98
        $region18: #{tpu_custom_call.1} parent=11 // pred_check_branch
          %156 = sbr.rel (%p154) target = $region20
        $region19: #{tpu_custom_call.1} parent=11 // pred_region
          %s158 = ssub.s32 16, 16
          %159 = vsyncadd [#allocation6], %s158
          %s161 = sshll.u32 [#allocation7], 4
          %s162 = int_to_ptr.vmem [resolvable:$true] %s161
          %164 = dma.hbm_to_vmem [thread:$0]  %s2, 16, %s162, [#allocation6]
        $region20: #{tpu_custom_call.1} parent=11 // pred_fallthru
          _
      $region12: #{tpu_custom_call.1} parent=5 // pred_fallthru
        _
      %p165 = scmp.lt.s32.totalorder %s16, 2
      // Predicated region
      $region21: #{tpu_custom_call.1} parent=5 // pred_check
        %p166 = pneg %p165
      $region22: #{tpu_custom_call.1} parent=5 // pred_check_branch
        %168 = sbr.rel (%p166) target = $region24
      $region23: #{tpu_custom_call.1} parent=5 // pred_region
        // Predicated region
        $region25: #{tpu_custom_call.1} parent=23 // pred_check
          %p169 = pneg %p50
        $region26: #{tpu_custom_call.1} parent=23 // pred_check_branch
          %171 = sbr.rel (%p169) target = $region28
        $region27: #{tpu_custom_call.1} parent=23 // pred_region
          %s172 = sand.u32 %s40, 1
          %s173 = scalar_lea.sflag [#allocation3], %s172
          %s174 = sand.u32 %s40, 1
          %s175 = smul.addr %s174, 512
          %s176 = scalar_lea.vmem [#allocation2], %s175
          %s177 = smul.u32 64, %s24
          %s179 = ssub.s32 8192, 8192
          %180 = vsyncadd %s173, %s179
          %s181 = smul.addr %s23, 64
          %s182 = sadd.s32 %s177, %s181
          %s183 = smul.addr %s182, 128
          %s184 = scalar_lea.hbm %s0, %s183
          %s185 = sshll.u32 %s176, 4
          %s186 = int_to_ptr.vmem [resolvable:$true] %s185
          %191 = dma.hbm_to_vmem [thread:$0]  %s184, 8192, %s186, %s173, 128, 128, 8
        $region28: #{tpu_custom_call.1} parent=23 // pred_fallthru
          _
      $region24: #{tpu_custom_call.1} parent=5 // pred_fallthru
        _
      %p192 = scmp.le.s32.totalorder 1, %s16
      %p193 = scmp.lt.s32.totalorder %s16, 3
      %p194 = pnand %p192, %p193
      %p195 = pneg %p194
      // Predicated region
      $region29: #{tpu_custom_call.1} parent=5 // pred_check
        _
      $region30: #{tpu_custom_call.1} parent=5 // pred_check_branch
        %197 = sbr.rel (%p194) target = $region32
      $region31: #{tpu_custom_call.1} parent=5 // pred_region
        %s198 = ssub.s32 %s16, 1
        %s199 = sand.u32 %s43, 1
        %s200 = scalar_lea.sflag [#allocation3], %s199
        %s201 = sand.u32 %s43, 1
        %s202 = smul.addr %s201, 512
        %s203 = scalar_lea.vmem [#allocation2], %s202
        // Predicated region
        $region33: #{tpu_custom_call.1} parent=31 // pred_check
          %p204 = pneg %p56
        $region34: #{tpu_custom_call.1} parent=31 // pred_check_branch
          %206 = sbr.rel (%p204) target = $region36
        $region35: #{tpu_custom_call.1} parent=31 // pred_region
          %207 = dma.done %s200, 8192
        $region36: #{tpu_custom_call.1} parent=31 // pred_fallthru
          _
        // Predicated region
        $region37: #{tpu_custom_call.1} parent=31 // pred_check
          %p208 = pneg %p77
        $region38: #{tpu_custom_call.1} parent=31 // pred_check_branch
          %210 = sbr.rel (%p208) target = $region40
        $region39: #{tpu_custom_call.1} parent=31 // pred_region
          %211 = dma.done [#allocation6], 1024
        $region40: #{tpu_custom_call.1} parent=31 // pred_fallthru
          _
        // Predicated region
        $region41: #{tpu_custom_call.1} parent=31 // pred_check
          %p212 = pneg %p98
        $region42: #{tpu_custom_call.1} parent=31 // pred_check_branch
          %214 = sbr.rel (%p212) target = $region44
        $region43: #{tpu_custom_call.1} parent=31 // pred_region
          %215 = dma.done [#allocation6], 16
        $region44: #{tpu_custom_call.1} parent=31 // pred_fallthru
          _
        %s216 = sand.u32 %s43, 1
        %s217 = scalar_lea.sflag [#allocation3], %s216
        %s218 = sand.u32 %s43, 1
        %s219 = smul.addr %s218, 512
        %s220 = scalar_lea.vmem [#allocation2], %s219
        %p221 = pneg %p56
        %p222 = pneg %p53
        %p223 = pneg %p77
        %p224 = pneg %p74
        %p225 = pneg %p98
        %p226 = pneg %p95
        %p227 = pneg %p126
        %p228 = pneg %p123
        %s229 = sand.u32 %s113, 1
        %s230 = scalar_lea.sflag [#allocation4], %s229
        %s231 = sand.u32 %s113, 1
        %s232 = smul.addr %s231, 256
        %s233 = scalar_lea.vmem [#allocation8], %s232
        %s234 = smul.u32 64, %s26
        %s235 = smul.u32 64, %s26
        %v237 = vld [vmem:[%s203] sm:$0xff]
        %v238 = vld [vmem:[%s203 + $0x8] sm:$0xff]
        %v239 = vld [vmem:[%s203 + $0x10] sm:$0xff]
        %v240 = vld [vmem:[%s203 + $0x18] sm:$0xff]
        %v241 = vld [vmem:[%s203 + $0x20] sm:$0xff]
        %v242 = vld [vmem:[%s203 + $0x28] sm:$0xff]
        %v243 = vld [vmem:[%s203 + $0x30] sm:$0xff]
        %v244 = vld [vmem:[%s203 + $0x38] sm:$0xff]
        %v245 = vld [vmem:[%s203 + $0x40] sm:$0xff]
        %v246 = vld [vmem:[%s203 + $0x48] sm:$0xff]
        %v247 = vld [vmem:[%s203 + $0x50] sm:$0xff]
        %v248 = vld [vmem:[%s203 + $0x58] sm:$0xff]
        %v249 = vld [vmem:[%s203 + $0x60] sm:$0xff]
        %v250 = vld [vmem:[%s203 + $0x68] sm:$0xff]
        %v251 = vld [vmem:[%s203 + $0x70] sm:$0xff]
        %v252 = vld [vmem:[%s203 + $0x78] sm:$0xff]
        %v253 = vld [vmem:[%s203 + $0x80] sm:$0xff]
        %v254 = vld [vmem:[%s203 + $0x88] sm:$0xff]
        %v255 = vld [vmem:[%s203 + $0x90] sm:$0xff]
        %v256 = vld [vmem:[%s203 + $0x98] sm:$0xff]
        %v257 = vld [vmem:[%s203 + $0xa0] sm:$0xff]
        %v258 = vld [vmem:[%s203 + $0xa8] sm:$0xff]
        %v259 = vld [vmem:[%s203 + $0xb0] sm:$0xff]
        %v260 = vld [vmem:[%s203 + $0xb8] sm:$0xff]
        %v261 = vld [vmem:[%s203 + $0xc0] sm:$0xff]
        %v262 = vld [vmem:[%s203 + $0xc8] sm:$0xff]
        %v263 = vld [vmem:[%s203 + $0xd0] sm:$0xff]
        %v264 = vld [vmem:[%s203 + $0xd8] sm:$0xff]
        %v265 = vld [vmem:[%s203 + $0xe0] sm:$0xff]
        %v266 = vld [vmem:[%s203 + $0xe8] sm:$0xff]
        %v267 = vld [vmem:[%s203 + $0xf0] sm:$0xff]
        %v268 = vld [vmem:[%s203 + $0xf8] sm:$0xff]
        %v269 = vld [vmem:[%s203 + $0x100] sm:$0xff]
        %v270 = vld [vmem:[%s203 + $0x108] sm:$0xff]
        %v271 = vld [vmem:[%s203 + $0x110] sm:$0xff]
        %v272 = vld [vmem:[%s203 + $0x118] sm:$0xff]
        %v273 = vld [vmem:[%s203 + $0x120] sm:$0xff]
        %v274 = vld [vmem:[%s203 + $0x128] sm:$0xff]
        %v275 = vld [vmem:[%s203 + $0x130] sm:$0xff]
        %v276 = vld [vmem:[%s203 + $0x138] sm:$0xff]
        %v277 = vld [vmem:[%s203 + $0x140] sm:$0xff]
        %v278 = vld [vmem:[%s203 + $0x148] sm:$0xff]
        %v279 = vld [vmem:[%s203 + $0x150] sm:$0xff]
        %v280 = vld [vmem:[%s203 + $0x158] sm:$0xff]
        %v281 = vld [vmem:[%s203 + $0x160] sm:$0xff]
        %v282 = vld [vmem:[%s203 + $0x168] sm:$0xff]
        %v283 = vld [vmem:[%s203 + $0x170] sm:$0xff]
        %v284 = vld [vmem:[%s203 + $0x178] sm:$0xff]
        %v285 = vld [vmem:[%s203 + $0x180] sm:$0xff]
        %v286 = vld [vmem:[%s203 + $0x188] sm:$0xff]
        %v287 = vld [vmem:[%s203 + $0x190] sm:$0xff]
        %v288 = vld [vmem:[%s203 + $0x198] sm:$0xff]
        %v289 = vld [vmem:[%s203 + $0x1a0] sm:$0xff]
        %v290 = vld [vmem:[%s203 + $0x1a8] sm:$0xff]
        %v291 = vld [vmem:[%s203 + $0x1b0] sm:$0xff]
        %v292 = vld [vmem:[%s203 + $0x1b8] sm:$0xff]
        %v293 = vld [vmem:[%s203 + $0x1c0] sm:$0xff]
        %v294 = vld [vmem:[%s203 + $0x1c8] sm:$0xff]
        %v295 = vld [vmem:[%s203 + $0x1d0] sm:$0xff]
        %v296 = vld [vmem:[%s203 + $0x1d8] sm:$0xff]
        %v297 = vld [vmem:[%s203 + $0x1e0] sm:$0xff]
        %v298 = vld [vmem:[%s203 + $0x1e8] sm:$0xff]
        %v299 = vld [vmem:[%s203 + $0x1f0] sm:$0xff]
        %v300 = vld [vmem:[%s203 + $0x1f8] sm:$0xff]
        %v301 = vpack.c.bf16 %v238, %v237
        %v302 = vpack.c.bf16 %v240, %v239
        %v303 = vpack.c.bf16 %v242, %v241
        %v304 = vpack.c.bf16 %v244, %v243
        %v305 = vpack.c.bf16 %v246, %v245
        %v306 = vpack.c.bf16 %v248, %v247
        %v307 = vpack.c.bf16 %v250, %v249
        %v308 = vpack.c.bf16 %v252, %v251
        %v309 = vpack.c.bf16 %v254, %v253
        %v310 = vpack.c.bf16 %v256, %v255
        %v311 = vpack.c.bf16 %v258, %v257
        %v312 = vpack.c.bf16 %v260, %v259
        %v313 = vpack.c.bf16 %v262, %v261
        %v314 = vpack.c.bf16 %v264, %v263
        %v315 = vpack.c.bf16 %v266, %v265
        %v316 = vpack.c.bf16 %v268, %v267
        %v317 = vpack.c.bf16 %v270, %v269
        %v318 = vpack.c.bf16 %v272, %v271
        %v319 = vpack.c.bf16 %v274, %v273
        %v320 = vpack.c.bf16 %v276, %v275
        %v321 = vpack.c.bf16 %v278, %v277
        %v322 = vpack.c.bf16 %v280, %v279
        %v323 = vpack.c.bf16 %v282, %v281
        %v324 = vpack.c.bf16 %v284, %v283
        %v325 = vpack.c.bf16 %v286, %v285
        %v326 = vpack.c.bf16 %v288, %v287
        %v327 = vpack.c.bf16 %v290, %v289
        %v328 = vpack.c.bf16 %v292, %v291
        %v329 = vpack.c.bf16 %v294, %v293
        %v330 = vpack.c.bf16 %v296, %v295
        %v331 = vpack.c.bf16 %v298, %v297
        %v332 = vpack.c.bf16 %v300, %v299
        %v333 = vld [vmem:[#allocation5] sm:$0xf]
        %v334 = vld [vmem:[#allocation5 + $0x4] sm:$0xf]
        %v335 = vld [vmem:[#allocation5 + $0x8] sm:$0xf]
        %v336 = vld [vmem:[#allocation5 + $0xc] sm:$0xf]
        %v337 = vld [vmem:[#allocation5 + $0x10] sm:$0xf]
        %v338 = vld [vmem:[#allocation5 + $0x14] sm:$0xf]
        %v339 = vld [vmem:[#allocation5 + $0x18] sm:$0xf]
        %v340 = vld [vmem:[#allocation5 + $0x1c] sm:$0xf]
        %v341 = vld [vmem:[#allocation5 + $0x20] sm:$0xf]
        %v342 = vld [vmem:[#allocation5 + $0x24] sm:$0xf]
        %v343 = vld [vmem:[#allocation5 + $0x28] sm:$0xf]
        %v344 = vld [vmem:[#allocation5 + $0x2c] sm:$0xf]
        %v345 = vld [vmem:[#allocation5 + $0x30] sm:$0xf]
        %v346 = vld [vmem:[#allocation5 + $0x34] sm:$0xf]
        %v347 = vld [vmem:[#allocation5 + $0x38] sm:$0xf]
        %v348 = vld [vmem:[#allocation5 + $0x3c] sm:$0xf]
        %v349 = vld [vmem:[#allocation7] sm:$0x1]
        %v351 = vlaneseq
        %v352 = vshrl.u32 %v351, 7
        %v353 = vsub.s32 0, %v352
        %v354 = vrot.slane %v349, %v353
        %v372 = vunpack.c.l.b16 %v333
        %v373 = vunpack.c.l.b16 %v334
        %v374 = vunpack.c.l.b16 %v335
        %v375 = vunpack.c.l.b16 %v336
        %v376 = vunpack.c.l.b16 %v337
        %v377 = vunpack.c.l.b16 %v338
        %v378 = vunpack.c.l.b16 %v339
        %v379 = vunpack.c.l.b16 %v340
        %v380 = vunpack.c.l.b16 %v341
        %v381 = vunpack.c.l.b16 %v342
        %v382 = vunpack.c.l.b16 %v343
        %v383 = vunpack.c.l.b16 %v344
        %v384 = vunpack.c.l.b16 %v345
        %v385 = vunpack.c.l.b16 %v346
        %v386 = vunpack.c.l.b16 %v347
        %v387 = vunpack.c.l.b16 %v348
        %v388 = vpack.c.b16 %v373, %v372
        %v389 = vpack.c.b16 %v375, %v374
        %v390 = vpack.c.b16 %v377, %v376
        %v391 = vpack.c.b16 %v379, %v378
        %v392 = vpack.c.b16 %v381, %v380
        %v393 = vpack.c.b16 %v383, %v382
        %v394 = vpack.c.b16 %v385, %v384
        %v395 = vpack.c.b16 %v387, %v386
        %404 = vmatprep.subr.bf16.mxu0 0
        %405 = vmatpush1.bf16.msra.mxu0 %v388
        %406 = vmatprep.subr.bf16.mxu0 0
        %407 = vmatpush1.bf16.msra.mxu0 %v389
        %408 = vmatprep.subr.bf16.mxu0 0
        %409 = vmatpush1.bf16.msra.mxu0 %v390
        %410 = vmatprep.subr.bf16.mxu0 0
        %411 = vmatpush1.bf16.msra.mxu0 %v391
        %412 = vmatprep.subr.bf16.mxu0 0
        %413 = vmatpush1.bf16.msra.mxu0 %v392
        %414 = vmatprep.subr.bf16.mxu0 0
        %415 = vmatpush1.bf16.msra.mxu0 %v393
        %416 = vmatprep.subr.bf16.mxu0 0
        %417 = vmatpush1.bf16.msra.mxu0 %v394
        %418 = vmatprep.subr.bf16.mxu0 0
        %419 = vmatpush1.bf16.msra.mxu0 %v395
        %420 = vmatprep.subr.bf16.mxu0 0
        %421 = vmatpush1.bf16.msra.mxu0 0
        %422 = vmatprep.subr.bf16.mxu0 0
        %423 = vmatpush1.bf16.msra.mxu0 0
        %424 = vmatprep.subr.bf16.mxu0 0
        %425 = vmatpush1.bf16.msra.mxu0 0
        %426 = vmatprep.subr.bf16.mxu0 0
        %427 = vmatpush1.bf16.msra.mxu0 0
        %428 = vmatprep.subr.bf16.mxu0 0
        %429 = vmatpush1.bf16.msra.mxu0 0
        %430 = vmatprep.subr.bf16.mxu0 0
        %431 = vmatpush1.bf16.msra.mxu0 0
        %432 = vmatprep.subr.bf16.mxu0 0
        %433 = vmatpush1.bf16.msra.mxu0 0
        %434 = vmatprep.subr.bf16.mxu0 0
        %435 = vmatpush1.bf16.msra.mxu0 0
        %436 = vmatprep.mubr.bf16.mxu0 0
        %437 = vmatmul.mubr.bf16.gmra.mrb[0].mxu0 %v301
        %v438 = vpop.f32.mrb[0].mxu0
        %v439 = vadd.f32 %v354, %v438
        %v440 = vpop.f32.mrb[0].mxu0
        %v441 = vpop.f32.mrb[0].mxu0
        %v442 = vadd.f32 %v354, %v441
        %v443 = vpop.f32.mrb[0].mxu0
        %444 = vmatprep.mubr.bf16.mxu0 0
        %445 = vmatmul.mubr.bf16.gmra.mrb[0].mxu0 %v302
        %v446 = vpop.f32.mrb[0].mxu0
        %v447 = vadd.f32 %v354, %v446
        %v448 = vpop.f32.mrb[0].mxu0
        %v449 = vpop.f32.mrb[0].mxu0
        %v450 = vadd.f32 %v354, %v449
        %v451 = vpop.f32.mrb[0].mxu0
        %452 = vmatprep.mubr.bf16.mxu0 0
        %453 = vmatmul.mubr.bf16.gmra.mrb[0].mxu0 %v303
        %v454 = vpop.f32.mrb[0].mxu0
        %v455 = vadd.f32 %v354, %v454
        %v456 = vpop.f32.mrb[0].mxu0
        %v457 = vpop.f32.mrb[0].mxu0
        %v458 = vadd.f32 %v354, %v457
        %v459 = vpop.f32.mrb[0].mxu0
        %460 = vmatprep.mubr.bf16.mxu0 0
        %461 = vmatmul.mubr.bf16.gmra.mrb[0].mxu0 %v304
        %v462 = vpop.f32.mrb[0].mxu0
        %v463 = vadd.f32 %v354, %v462
        %v464 = vpop.f32.mrb[0].mxu0
        %v465 = vpop.f32.mrb[0].mxu0
        %v466 = vadd.f32 %v354, %v465
        %v467 = vpop.f32.mrb[0].mxu0
        %468 = vmatprep.mubr.bf16.mxu0 0
        %469 = vmatmul.mubr.bf16.gmra.mrb[0].mxu0 %v305
        %v470 = vpop.f32.mrb[0].mxu0
        %v471 = vadd.f32 %v354, %v470
        %v472 = vpop.f32.mrb[0].mxu0
        %v473 = vpop.f32.mrb[0].mxu0
        %v474 = vadd.f32 %v354, %v473
        %v475 = vpop.f32.mrb[0].mxu0
        %476 = vmatprep.mubr.bf16.mxu0 0
        %477 = vmatmul.mubr.bf16.gmra.mrb[0].mxu0 %v306
        %v478 = vpop.f32.mrb[0].mxu0
        %v479 = vadd.f32 %v354, %v478
        %v480 = vpop.f32.mrb[0].mxu0
        %v481 = vpop.f32.mrb[0].mxu0
        %v482 = vadd.f32 %v354, %v481
        %v483 = vpop.f32.mrb[0].mxu0
        %484 = vmatprep.mubr.bf16.mxu0 0
        %485 = vmatmul.mubr.bf16.gmra.mrb[0].mxu0 %v307
        %v486 = vpop.f32.mrb[0].mxu0
        %v487 = vadd.f32 %v354, %v486
        %v488 = vpop.f32.mrb[0].mxu0
        %v489 = vpop.f32.mrb[0].mxu0
        %v490 = vadd.f32 %v354, %v489
        %v491 = vpop.f32.mrb[0].mxu0
        %492 = vmatprep.mubr.bf16.mxu0 0
        %493 = vmatmul.mubr.bf16.gmra.mrb[0].mxu0 %v308
        %v494 = vpop.f32.mrb[0].mxu0
        %v495 = vadd.f32 %v354, %v494
        %v496 = vpop.f32.mrb[0].mxu0
        %v497 = vpop.f32.mrb[0].mxu0
        %v498 = vadd.f32 %v354, %v497
        %v499 = vpop.f32.mrb[0].mxu0
        %500 = vmatprep.mubr.bf16.mxu0 0
        %501 = vmatmul.mubr.bf16.gmra.mrb[0].mxu0 %v309
        %v502 = vpop.f32.mrb[0].mxu0
        %v503 = vadd.f32 %v354, %v502
        %v504 = vpop.f32.mrb[0].mxu0
        %v505 = vpop.f32.mrb[0].mxu0
        %v506 = vadd.f32 %v354, %v505
        %v507 = vpop.f32.mrb[0].mxu0
        %508 = vmatprep.mubr.bf16.mxu0 0
        %509 = vmatmul.mubr.bf16.gmra.mrb[0].mxu0 %v310
        %v510 = vpop.f32.mrb[0].mxu0
        %v511 = vadd.f32 %v354, %v510
        %v512 = vpop.f32.mrb[0].mxu0
        %v513 = vpop.f32.mrb[0].mxu0
        %v514 = vadd.f32 %v354, %v513
        %v515 = vpop.f32.mrb[0].mxu0
        %516 = vmatprep.mubr.bf16.mxu0 0
        %517 = vmatmul.mubr.bf16.gmra.mrb[0].mxu0 %v311
        %v518 = vpop.f32.mrb[0].mxu0
        %v519 = vadd.f32 %v354, %v518
        %v520 = vpop.f32.mrb[0].mxu0
        %v521 = vpop.f32.mrb[0].mxu0
        %v522 = vadd.f32 %v354, %v521
        %v523 = vpop.f32.mrb[0].mxu0
        %524 = vmatprep.mubr.bf16.mxu0 0
        %525 = vmatmul.mubr.bf16.gmra.mrb[0].mxu0 %v312
        %v526 = vpop.f32.mrb[0].mxu0
        %v527 = vadd.f32 %v354, %v526
        %v528 = vpop.f32.mrb[0].mxu0
        %v529 = vpop.f32.mrb[0].mxu0
        %v530 = vadd.f32 %v354, %v529
        %v531 = vpop.f32.mrb[0].mxu0
        %532 = vmatprep.mubr.bf16.mxu0 0
        %533 = vmatmul.mubr.bf16.gmra.mrb[0].mxu0 %v313
        %v534 = vpop.f32.mrb[0].mxu0
        %v535 = vadd.f32 %v354, %v534
        %v536 = vpop.f32.mrb[0].mxu0
        %v537 = vpop.f32.mrb[0].mxu0
        %v538 = vadd.f32 %v354, %v537
        %v539 = vpop.f32.mrb[0].mxu0
        %540 = vmatprep.mubr.bf16.mxu0 0
        %541 = vmatmul.mubr.bf16.gmra.mrb[0].mxu0 %v314
        %v542 = vpop.f32.mrb[0].mxu0
        %v543 = vadd.f32 %v354, %v542
        %v544 = vpop.f32.mrb[0].mxu0
        %v545 = vpop.f32.mrb[0].mxu0
        %v546 = vadd.f32 %v354, %v545
        %v547 = vpop.f32.mrb[0].mxu0
        %548 = vmatprep.mubr.bf16.mxu0 0
        %549 = vmatmul.mubr.bf16.gmra.mrb[0].mxu0 %v315
        %v550 = vpop.f32.mrb[0].mxu0
        %v551 = vadd.f32 %v354, %v550
        %v552 = vpop.f32.mrb[0].mxu0
        %v553 = vpop.f32.mrb[0].mxu0
        %v554 = vadd.f32 %v354, %v553
        %v555 = vpop.f32.mrb[0].mxu0
        %556 = vmatprep.mubr.bf16.mxu0 0
        %557 = vmatmul.mubr.bf16.gmra.mrb[0].mxu0 %v316
        %v558 = vpop.f32.mrb[0].mxu0
        %v559 = vadd.f32 %v354, %v558
        %v560 = vpop.f32.mrb[0].mxu0
        %v561 = vpop.f32.mrb[0].mxu0
        %v562 = vadd.f32 %v354, %v561
        %v563 = vpop.f32.mrb[0].mxu0
        %564 = vmatprep.mubr.bf16.mxu0 0
        %565 = vmatmul.mubr.bf16.gmra.mrb[0].mxu0 %v317
        %v566 = vpop.f32.mrb[0].mxu0
        %v567 = vadd.f32 %v354, %v566
        %v568 = vpop.f32.mrb[0].mxu0
        %v569 = vpop.f32.mrb[0].mxu0
        %v570 = vadd.f32 %v354, %v569
        %v571 = vpop.f32.mrb[0].mxu0
        %572 = vmatprep.mubr.bf16.mxu0 0
        %573 = vmatmul.mubr.bf16.gmra.mrb[0].mxu0 %v318
        %v574 = vpop.f32.mrb[0].mxu0
        %v575 = vadd.f32 %v354, %v574
        %v576 = vpop.f32.mrb[0].mxu0
        %v577 = vpop.f32.mrb[0].mxu0
        %v578 = vadd.f32 %v354, %v577
        %v579 = vpop.f32.mrb[0].mxu0
        %580 = vmatprep.mubr.bf16.mxu0 0
        %581 = vmatmul.mubr.bf16.gmra.mrb[0].mxu0 %v319
        %v582 = vpop.f32.mrb[0].mxu0
        %v583 = vadd.f32 %v354, %v582
        %v584 = vpop.f32.mrb[0].mxu0
        %v585 = vpop.f32.mrb[0].mxu0
        %v586 = vadd.f32 %v354, %v585
        %v587 = vpop.f32.mrb[0].mxu0
        %588 = vmatprep.mubr.bf16.mxu0 0
        %589 = vmatmul.mubr.bf16.gmra.mrb[0].mxu0 %v320
        %v590 = vpop.f32.mrb[0].mxu0
        %v591 = vadd.f32 %v354, %v590
        %v592 = vpop.f32.mrb[0].mxu0
        %v593 = vpop.f32.mrb[0].mxu0
        %v594 = vadd.f32 %v354, %v593
        %v595 = vpop.f32.mrb[0].mxu0
        %596 = vmatprep.mubr.bf16.mxu0 0
        %597 = vmatmul.mubr.bf16.gmra.mrb[0].mxu0 %v321
        %v598 = vpop.f32.mrb[0].mxu0
        %v599 = vadd.f32 %v354, %v598
        %v600 = vpop.f32.mrb[0].mxu0
        %v601 = vpop.f32.mrb[0].mxu0
        %v602 = vadd.f32 %v354, %v601
        %v603 = vpop.f32.mrb[0].mxu0
        %604 = vmatprep.mubr.bf16.mxu0 0
        %605 = vmatmul.mubr.bf16.gmra.mrb[0].mxu0 %v322
        %v606 = vpop.f32.mrb[0].mxu0
        %v607 = vadd.f32 %v354, %v606
        %v608 = vpop.f32.mrb[0].mxu0
        %v609 = vpop.f32.mrb[0].mxu0
        %v610 = vadd.f32 %v354, %v609
        %v611 = vpop.f32.mrb[0].mxu0
        %612 = vmatprep.mubr.bf16.mxu0 0
        %613 = vmatmul.mubr.bf16.gmra.mrb[0].mxu0 %v323
        %v614 = vpop.f32.mrb[0].mxu0
        %v615 = vadd.f32 %v354, %v614
        %v616 = vpop.f32.mrb[0].mxu0
        %v617 = vpop.f32.mrb[0].mxu0
        %v618 = vadd.f32 %v354, %v617
        %v619 = vpop.f32.mrb[0].mxu0
        %620 = vmatprep.mubr.bf16.mxu0 0
        %621 = vmatmul.mubr.bf16.gmra.mrb[0].mxu0 %v324
        %v622 = vpop.f32.mrb[0].mxu0
        %v623 = vadd.f32 %v354, %v622
        %v624 = vpop.f32.mrb[0].mxu0
        %v625 = vpop.f32.mrb[0].mxu0
        %v626 = vadd.f32 %v354, %v625
        %v627 = vpop.f32.mrb[0].mxu0
        %628 = vmatprep.mubr.bf16.mxu0 0
        %629 = vmatmul.mubr.bf16.gmra.mrb[0].mxu0 %v325
        %v630 = vpop.f32.mrb[0].mxu0
        %v631 = vadd.f32 %v354, %v630
        %v632 = vpop.f32.mrb[0].mxu0
        %v633 = vpop.f32.mrb[0].mxu0
        %v634 = vadd.f32 %v354, %v633
        %v635 = vpop.f32.mrb[0].mxu0
        %636 = vmatprep.mubr.bf16.mxu0 0
        %637 = vmatmul.mubr.bf16.gmra.mrb[0].mxu0 %v326
        %v638 = vpop.f32.mrb[0].mxu0
        %v639 = vadd.f32 %v354, %v638
        %v640 = vpop.f32.mrb[0].mxu0
        %v641 = vpop.f32.mrb[0].mxu0
        %v642 = vadd.f32 %v354, %v641
        %v643 = vpop.f32.mrb[0].mxu0
        %644 = vmatprep.mubr.bf16.mxu0 0
        %645 = vmatmul.mubr.bf16.gmra.mrb[0].mxu0 %v327
        %v646 = vpop.f32.mrb[0].mxu0
        %v647 = vadd.f32 %v354, %v646
        %v648 = vpop.f32.mrb[0].mxu0
        %v649 = vpop.f32.mrb[0].mxu0
        %v650 = vadd.f32 %v354, %v649
        %v651 = vpop.f32.mrb[0].mxu0
        %652 = vmatprep.mubr.bf16.mxu0 0
        %653 = vmatmul.mubr.bf16.gmra.mrb[0].mxu0 %v328
        %v654 = vpop.f32.mrb[0].mxu0
        %v655 = vadd.f32 %v354, %v654
        %v656 = vpop.f32.mrb[0].mxu0
        %v657 = vpop.f32.mrb[0].mxu0
        %v658 = vadd.f32 %v354, %v657
        %v659 = vpop.f32.mrb[0].mxu0
        %660 = vmatprep.mubr.bf16.mxu0 0
        %661 = vmatmul.mubr.bf16.gmra.mrb[0].mxu0 %v329
        %v662 = vpop.f32.mrb[0].mxu0
        %v663 = vadd.f32 %v354, %v662
        %v664 = vpop.f32.mrb[0].mxu0
        %v665 = vpop.f32.mrb[0].mxu0
        %v666 = vadd.f32 %v354, %v665
        %v667 = vpop.f32.mrb[0].mxu0
        %668 = vmatprep.mubr.bf16.mxu0 0
        %669 = vmatmul.mubr.bf16.gmra.mrb[0].mxu0 %v330
        %v670 = vpop.f32.mrb[0].mxu0
        %v671 = vadd.f32 %v354, %v670
        %v672 = vpop.f32.mrb[0].mxu0
        %v673 = vpop.f32.mrb[0].mxu0
        %v674 = vadd.f32 %v354, %v673
        %v675 = vpop.f32.mrb[0].mxu0
        %676 = vmatprep.mubr.bf16.mxu0 0
        %677 = vmatmul.mubr.bf16.gmra.mrb[0].mxu0 %v331
        %v678 = vpop.f32.mrb[0].mxu0
        %v679 = vadd.f32 %v354, %v678
        %v680 = vpop.f32.mrb[0].mxu0
        %v681 = vpop.f32.mrb[0].mxu0
        %v682 = vadd.f32 %v354, %v681
        %v683 = vpop.f32.mrb[0].mxu0
        %684 = vmatprep.mubr.bf16.mxu0 0
        %685 = vmatmul.mubr.bf16.gmra.mrb[0].mxu0 %v332
        %v686 = vpop.f32.mrb[0].mxu0
        %v687 = vadd.f32 %v354, %v686
        %v688 = vpop.f32.mrb[0].mxu0
        %v689 = vpop.f32.mrb[0].mxu0
        %v690 = vadd.f32 %v354, %v689
        %v691 = vpop.f32.mrb[0].mxu0
        %692 = vdwg.mxu0
        %v693 = vpack.c.bf16 %v442, %v439
        %v694 = vpack.c.bf16 %v450, %v447
        %v695 = vpack.c.bf16 %v458, %v455
        %v696 = vpack.c.bf16 %v466, %v463
        %v697 = vpack.c.bf16 %v474, %v471
        %v698 = vpack.c.bf16 %v482, %v479
        %v699 = vpack.c.bf16 %v490, %v487
        %v700 = vpack.c.bf16 %v498, %v495
        %v701 = vpack.c.bf16 %v506, %v503
        %v702 = vpack.c.bf16 %v514, %v511
        %v703 = vpack.c.bf16 %v522, %v519
        %v704 = vpack.c.bf16 %v530, %v527
        %v705 = vpack.c.bf16 %v538, %v535
        %v706 = vpack.c.bf16 %v546, %v543
        %v707 = vpack.c.bf16 %v554, %v551
        %v708 = vpack.c.bf16 %v562, %v559
        %v709 = vpack.c.bf16 %v570, %v567
        %v710 = vpack.c.bf16 %v578, %v575
        %v711 = vpack.c.bf16 %v586, %v583
        %v712 = vpack.c.bf16 %v594, %v591
        %v713 = vpack.c.bf16 %v602, %v599
        %v714 = vpack.c.bf16 %v610, %v607
        %v715 = vpack.c.bf16 %v618, %v615
        %v716 = vpack.c.bf16 %v626, %v623
        %v717 = vpack.c.bf16 %v634, %v631
        %v718 = vpack.c.bf16 %v642, %v639
        %v719 = vpack.c.bf16 %v650, %v647
        %v720 = vpack.c.bf16 %v658, %v655
        %v721 = vpack.c.bf16 %v666, %v663
        %v722 = vpack.c.bf16 %v674, %v671
        %v723 = vpack.c.bf16 %v682, %v679
        %v724 = vpack.c.bf16 %v690, %v687
        %v757 = vunpack.c.l.b16 %v693
        %v758 = vunpack.c.h.b16 %v693
        %v759 = vunpack.c.l.b16 %v694
        %v760 = vunpack.c.h.b16 %v694
        %v761 = vunpack.c.l.b16 %v695
        %v762 = vunpack.c.h.b16 %v695
        %v763 = vunpack.c.l.b16 %v696
        %v764 = vunpack.c.h.b16 %v696
        %v765 = vunpack.c.l.b16 %v697
        %v766 = vunpack.c.h.b16 %v697
        %v767 = vunpack.c.l.b16 %v698
        %v768 = vunpack.c.h.b16 %v698
        %v769 = vunpack.c.l.b16 %v699
        %v770 = vunpack.c.h.b16 %v699
        %v771 = vunpack.c.l.b16 %v700
        %v772 = vunpack.c.h.b16 %v700
        %v773 = vunpack.c.l.b16 %v701
        %v774 = vunpack.c.h.b16 %v701
        %v775 = vunpack.c.l.b16 %v702
        %v776 = vunpack.c.h.b16 %v702
        %v777 = vunpack.c.l.b16 %v703
        %v778 = vunpack.c.h.b16 %v703
        %v779 = vunpack.c.l.b16 %v704
        %v780 = vunpack.c.h.b16 %v704
        %v781 = vunpack.c.l.b16 %v705
        %v782 = vunpack.c.h.b16 %v705
        %v783 = vunpack.c.l.b16 %v706
        %v784 = vunpack.c.h.b16 %v706
        %v785 = vunpack.c.l.b16 %v707
        %v786 = vunpack.c.h.b16 %v707
        %v787 = vunpack.c.l.b16 %v708
        %v788 = vunpack.c.h.b16 %v708
        %v789 = vunpack.c.l.b16 %v709
        %v790 = vunpack.c.h.b16 %v709
        %v791 = vunpack.c.l.b16 %v710
        %v792 = vunpack.c.h.b16 %v710
        %v793 = vunpack.c.l.b16 %v711
        %v794 = vunpack.c.h.b16 %v711
        %v795 = vunpack.c.l.b16 %v712
        %v796 = vunpack.c.h.b16 %v712
        %v797 = vunpack.c.l.b16 %v713
        %v798 = vunpack.c.h.b16 %v713
        %v799 = vunpack.c.l.b16 %v714
        %v800 = vunpack.c.h.b16 %v714
        %v801 = vunpack.c.l.b16 %v715
        %v802 = vunpack.c.h.b16 %v715
        %v803 = vunpack.c.l.b16 %v716
        %v804 = vunpack.c.h.b16 %v716
        %v805 = vunpack.c.l.b16 %v717
        %v806 = vunpack.c.h.b16 %v717
        %v807 = vunpack.c.l.b16 %v718
        %v808 = vunpack.c.h.b16 %v718
        %v809 = vunpack.c.l.b16 %v719
        %v810 = vunpack.c.h.b16 %v719
        %v811 = vunpack.c.l.b16 %v720
        %v812 = vunpack.c.h.b16 %v720
        %v813 = vunpack.c.l.b16 %v721
        %v814 = vunpack.c.h.b16 %v721
        %v815 = vunpack.c.l.b16 %v722
        %v816 = vunpack.c.h.b16 %v722
        %v817 = vunpack.c.l.b16 %v723
        %v818 = vunpack.c.h.b16 %v723
        %v819 = vunpack.c.l.b16 %v724
        %v820 = vunpack.c.h.b16 %v724
        %v821 = vpack.c.b16 %v757, %v757
        %v822 = vpack.c.b16 %v758, %v758
        %v823 = vpack.c.b16 %v759, %v759
        %v824 = vpack.c.b16 %v760, %v760
        %v825 = vpack.c.b16 %v761, %v761
        %v826 = vpack.c.b16 %v762, %v762
        %v827 = vpack.c.b16 %v763, %v763
        %v828 = vpack.c.b16 %v764, %v764
        %v829 = vpack.c.b16 %v765, %v765
        %v830 = vpack.c.b16 %v766, %v766
        %v831 = vpack.c.b16 %v767, %v767
        %v832 = vpack.c.b16 %v768, %v768
        %v833 = vpack.c.b16 %v769, %v769
        %v834 = vpack.c.b16 %v770, %v770
        %v835 = vpack.c.b16 %v771, %v771
        %v836 = vpack.c.b16 %v772, %v772
        %v837 = vpack.c.b16 %v773, %v773
        %v838 = vpack.c.b16 %v774, %v774
        %v839 = vpack.c.b16 %v775, %v775
        %v840 = vpack.c.b16 %v776, %v776
        %v841 = vpack.c.b16 %v777, %v777
        %v842 = vpack.c.b16 %v778, %v778
        %v843 = vpack.c.b16 %v779, %v779
        %v844 = vpack.c.b16 %v780, %v780
        %v845 = vpack.c.b16 %v781, %v781
        %v846 = vpack.c.b16 %v782, %v782
        %v847 = vpack.c.b16 %v783, %v783
        %v848 = vpack.c.b16 %v784, %v784
        %v849 = vpack.c.b16 %v785, %v785
        %v850 = vpack.c.b16 %v786, %v786
        %v851 = vpack.c.b16 %v787, %v787
        %v852 = vpack.c.b16 %v788, %v788
        %v853 = vpack.c.b16 %v789, %v789
        %v854 = vpack.c.b16 %v790, %v790
        %v855 = vpack.c.b16 %v791, %v791
        %v856 = vpack.c.b16 %v792, %v792
        %v857 = vpack.c.b16 %v793, %v793
        %v858 = vpack.c.b16 %v794, %v794
        %v859 = vpack.c.b16 %v795, %v795
        %v860 = vpack.c.b16 %v796, %v796
        %v861 = vpack.c.b16 %v797, %v797
        %v862 = vpack.c.b16 %v798, %v798
        %v863 = vpack.c.b16 %v799, %v799
        %v864 = vpack.c.b16 %v800, %v800
        %v865 = vpack.c.b16 %v801, %v801
        %v866 = vpack.c.b16 %v802, %v802
        %v867 = vpack.c.b16 %v803, %v803
        %v868 = vpack.c.b16 %v804, %v804
        %v869 = vpack.c.b16 %v805, %v805
        %v870 = vpack.c.b16 %v806, %v806
        %v871 = vpack.c.b16 %v807, %v807
        %v872 = vpack.c.b16 %v808, %v808
        %v873 = vpack.c.b16 %v809, %v809
        %v874 = vpack.c.b16 %v810, %v810
        %v875 = vpack.c.b16 %v811, %v811
        %v876 = vpack.c.b16 %v812, %v812
        %v877 = vpack.c.b16 %v813, %v813
        %v878 = vpack.c.b16 %v814, %v814
        %v879 = vpack.c.b16 %v815, %v815
        %v880 = vpack.c.b16 %v816, %v816
        %v881 = vpack.c.b16 %v817, %v817
        %v882 = vpack.c.b16 %v818, %v818
        %v883 = vpack.c.b16 %v819, %v819
        %v884 = vpack.c.b16 %v820, %v820
        %949 = vst [vmem:[%s233] sm:$0xf] %v821
        %950 = vst [vmem:[%s233 + $0x4] sm:$0xf] %v822
        %951 = vst [vmem:[%s233 + $0x8] sm:$0xf] %v823
        %952 = vst [vmem:[%s233 + $0xc] sm:$0xf] %v824
        %953 = vst [vmem:[%s233 + $0x10] sm:$0xf] %v825
        %954 = vst [vmem:[%s233 + $0x14] sm:$0xf] %v826
        %955 = vst [vmem:[%s233 + $0x18] sm:$0xf] %v827
        %956 = vst [vmem:[%s233 + $0x1c] sm:$0xf] %v828
        %957 = vst [vmem:[%s233 + $0x20] sm:$0xf] %v829
        %958 = vst [vmem:[%s233 + $0x24] sm:$0xf] %v830
        %959 = vst [vmem:[%s233 + $0x28] sm:$0xf] %v831
        %960 = vst [vmem:[%s233 + $0x2c] sm:$0xf] %v832
        %961 = vst [vmem:[%s233 + $0x30] sm:$0xf] %v833
        %962 = vst [vmem:[%s233 + $0x34] sm:$0xf] %v834
        %963 = vst [vmem:[%s233 + $0x38] sm:$0xf] %v835
        %964 = vst [vmem:[%s233 + $0x3c] sm:$0xf] %v836
        %965 = vst [vmem:[%s233 + $0x40] sm:$0xf] %v837
        %966 = vst [vmem:[%s233 + $0x44] sm:$0xf] %v838
        %967 = vst [vmem:[%s233 + $0x48] sm:$0xf] %v839
        %968 = vst [vmem:[%s233 + $0x4c] sm:$0xf] %v840
        %969 = vst [vmem:[%s233 + $0x50] sm:$0xf] %v841
        %970 = vst [vmem:[%s233 + $0x54] sm:$0xf] %v842
        %971 = vst [vmem:[%s233 + $0x58] sm:$0xf] %v843
        %972 = vst [vmem:[%s233 + $0x5c] sm:$0xf] %v844
        %973 = vst [vmem:[%s233 + $0x60] sm:$0xf] %v845
        %974 = vst [vmem:[%s233 + $0x64] sm:$0xf] %v846
        %975 = vst [vmem:[%s233 + $0x68] sm:$0xf] %v847
        %976 = vst [vmem:[%s233 + $0x6c] sm:$0xf] %v848
        %977 = vst [vmem:[%s233 + $0x70] sm:$0xf] %v849
        %978 = vst [vmem:[%s233 + $0x74] sm:$0xf] %v850
        %979 = vst [vmem:[%s233 + $0x78] sm:$0xf] %v851
        %980 = vst [vmem:[%s233 + $0x7c] sm:$0xf] %v852
        %981 = vst [vmem:[%s233 + $0x80] sm:$0xf] %v853
        %982 = vst [vmem:[%s233 + $0x84] sm:$0xf] %v854
        %983 = vst [vmem:[%s233 + $0x88] sm:$0xf] %v855
        %984 = vst [vmem:[%s233 + $0x8c] sm:$0xf] %v856
        %985 = vst [vmem:[%s233 + $0x90] sm:$0xf] %v857
        %986 = vst [vmem:[%s233 + $0x94] sm:$0xf] %v858
        %987 = vst [vmem:[%s233 + $0x98] sm:$0xf] %v859
        %988 = vst [vmem:[%s233 + $0x9c] sm:$0xf] %v860
        %989 = vst [vmem:[%s233 + $0xa0] sm:$0xf] %v861
        %990 = vst [vmem:[%s233 + $0xa4] sm:$0xf] %v862
        %991 = vst [vmem:[%s233 + $0xa8] sm:$0xf] %v863
        %992 = vst [vmem:[%s233 + $0xac] sm:$0xf] %v864
        %993 = vst [vmem:[%s233 + $0xb0] sm:$0xf] %v865
        %994 = vst [vmem:[%s233 + $0xb4] sm:$0xf] %v866
        %995 = vst [vmem:[%s233 + $0xb8] sm:$0xf] %v867
        %996 = vst [vmem:[%s233 + $0xbc] sm:$0xf] %v868
        %997 = vst [vmem:[%s233 + $0xc0] sm:$0xf] %v869
        %998 = vst [vmem:[%s233 + $0xc4] sm:$0xf] %v870
        %999 = vst [vmem:[%s233 + $0xc8] sm:$0xf] %v871
        %1000 = vst [vmem:[%s233 + $0xcc] sm:$0xf] %v872
        %1001 = vst [vmem:[%s233 + $0xd0] sm:$0xf] %v873
        %1002 = vst [vmem:[%s233 + $0xd4] sm:$0xf] %v874
        %1003 = vst [vmem:[%s233 + $0xd8] sm:$0xf] %v875
        %1004 = vst [vmem:[%s233 + $0xdc] sm:$0xf] %v876
        %1005 = vst [vmem:[%s233 + $0xe0] sm:$0xf] %v877
        %1006 = vst [vmem:[%s233 + $0xe4] sm:$0xf] %v878
        %1007 = vst [vmem:[%s233 + $0xe8] sm:$0xf] %v879
        %1008 = vst [vmem:[%s233 + $0xec] sm:$0xf] %v880
        %1009 = vst [vmem:[%s233 + $0xf0] sm:$0xf] %v881
        %1010 = vst [vmem:[%s233 + $0xf4] sm:$0xf] %v882
        %1011 = vst [vmem:[%s233 + $0xf8] sm:$0xf] %v883
        %1012 = vst [vmem:[%s233 + $0xfc] sm:$0xf] %v884
        %s1013 = sand.u32 %s113, 1
        %s1014 = scalar_lea.sflag [#allocation4], %s1013
        %s1015 = sand.u32 %s113, 1
        %s1016 = smul.addr %s1015, 256
        %s1017 = scalar_lea.vmem [#allocation8], %s1016
        // Predicated region
        $region45: #{tpu_custom_call.1} parent=31 // pred_check
          %p1018 = pneg %p123
        $region46: #{tpu_custom_call.1} parent=31 // pred_check_branch
          %1020 = sbr.rel (%p1018) target = $region48
        $region47: #{tpu_custom_call.1} parent=31 // pred_region
          %s1021 = smul.u32 64, %s26
          %s1023 = ssub.s32 4096, 4096
          %1024 = vsyncadd %s1014, %s1023
          %s1025 = smul.addr %s25, 64
          %s1026 = sadd.s32 %s1021, %s1025
          %s1027 = smul.addr %s1026, 64
          %s1028 = scalar_lea.hbm %s3, %s1027
          %s1029 = sshll.u32 %s1017, 4
          %s1030 = int_to_ptr.vmem [resolvable:$true] %s1029
          %1035 = dma.vmem_to_hbm [thread:$0]  %s1030, 4096, %s1028, %s1014, 64, 64, 4
        $region48: #{tpu_custom_call.1} parent=31 // pred_fallthru
          _
      $region32: #{tpu_custom_call.1} parent=5 // pred_fallthru
        _
      %p1036 = scmp.le.s32.totalorder 2, %s16
      // Predicated region
      $region49: #{tpu_custom_call.1} parent=5 // pred_check
        %p1037 = pneg %p1036
      $region50: #{tpu_custom_call.1} parent=5 // pred_check_branch
        %1039 = sbr.rel (%p1037) target = $region52
      $region51: #{tpu_custom_call.1} parent=5 // pred_region
        %s1040 = ssub.s32 %s16, 2
        // Predicated region
        $region53: #{tpu_custom_call.1} parent=51 // pred_check
          %p1041 = pneg %p129
        $region54: #{tpu_custom_call.1} parent=51 // pred_check_branch
          %1043 = sbr.rel (%p1041) target = $region56
        $region55: #{tpu_custom_call.1} parent=51 // pred_region
          %s1044 = sand.u32 %s114, 1
          %s1045 = scalar_lea.sflag [#allocation4], %s1044
          %s1046 = sand.u32 %s114, 1
          %s1047 = smul.addr %s1046, 256
          %s1048 = scalar_lea.vmem [#allocation8], %s1047
          %1049 = dma.done %s1045, 4096
        $region56: #{tpu_custom_call.1} parent=51 // pred_fallthru
          _
      $region52: #{tpu_custom_call.1} parent=5 // pred_fallthru
        _
    $region6: #{tpu_custom_call.1} parent=1 // loop_footer
      %s20 = sadd.s32 1, %s16
    $region7: #{tpu_custom_call.1} parent=1 // loop_footer_branch
      %15 = sbr.rel target = $region3
    $region8: #{tpu_custom_call.1} parent=1 // loop_exit
      _
    %1050 = vsyncpa [#allocation3], 1
    %s1051 = scalar_lea.sflag [#allocation3], 1
    %1052 = vsyncpa %s1051, 1
    %1053 = vsyncpa [#allocation6], 1
    %1054 = vsyncpa [#allocation4], 1
    %s1055 = scalar_lea.sflag [#allocation4], 1
    %1056 = vsyncpa %s1055, 1

</llo_original>
